<compile_context>
chip_gen: v5e
topology: v5e:2x2
jax: 0.10.0
libtpu: 0.0.40
codegen_flags: <defaults>
</compile_context>

<pallas_src>
import functools

import jax
import jax.numpy as jnp
from jax.experimental import pallas as pl
from jax.experimental.pallas import tpu as pltpu


# ------------------------------ in-kernel helpers --------------------------- #

def _zpad(h, axis, left, right):
    """Zero-pad a value along `axis` (in-kernel; concat with zero blocks)."""
    if left == 0 and right == 0:
        return h
    parts = []
    if left:
        s = list(h.shape)
        s[axis] = left
        parts.append(jnp.zeros(s, h.dtype))
    parts.append(h)
    if right:
        s = list(h.shape)
        s[axis] = right
        parts.append(jnp.zeros(s, h.dtype))
    return jnp.concatenate(parts, axis=axis)


# ------------------------------- Pallas kernels ----------------------------- #

def _convt1d_stack_kernel(*refs, metas):
    """Fused stride-1 ConvTranspose1d stack for one batch element (channels-last).

    refs = (x_ref (1,T,C0) bf16,
            w_0 (K0*C0, C1) bf16, b_0 (1, C1) f32,
            ...,
            o_ref (1,T,C_last))
    metas = ((K, relu), ...) per layer (static).
    """
    n = len(metas)
    x_ref = refs[0]
    w_refs = refs[1:1 + 2 * n:2]
    b_refs = refs[2:2 + 2 * n:2]
    o_ref = refs[1 + 2 * n]

    T = x_ref.shape[1]
    h = x_ref[0].astype(jnp.float32)                       # (T, Ci), stays on-chip

    for l, (K, relu) in enumerate(metas):
        Ci = h.shape[1]
        p = (K - 1) // 2
        hp = _zpad(h, 0, K - 1 - p, p)                     # (T+K-1, Ci), zero pad in-kernel
        # im2col: fold the K taps into the contraction dim -> one deep matmul
        if K > 1:
            slab = jnp.concatenate([hp[k:k + T, :] for k in range(K)], axis=1)   # (T, K*Ci)
        else:
            slab = hp
        y = jnp.dot(slab.astype(jnp.bfloat16), w_refs[l][...],
                    preferred_element_type=jnp.float32)    # (T, Co) f32 accumulator
        y = y + b_refs[l][...]
        if relu:
            y = jnp.maximum(y, 0.0)
        h = y                                              # next layer input (kept in f32)

    o_ref[0] = h.astype(o_ref.dtype)


def _convt2d_stack_kernel(*refs, metas):
    """Fused stride-1 ConvTranspose2d stack for one batch element (channels-last).

    refs = (x_ref (1,F,T,C0) bf16,
            w_0 (K0*K0*C0, C1) bf16, b_0 (1, C1) f32,
            ...,
            o_ref (1,F,T,C_last))
    """
    n = len(metas)
    x_ref = refs[0]
    w_refs = refs[1:1 + 2 * n:2]
    b_refs = refs[2:2 + 2 * n:2]
    o_ref = refs[1 + 2 * n]

    F = x_ref.shape[1]
    T = x_ref.shape[2]
    h = x_ref[0].astype(jnp.float32)                       # (F, T, Ci)

    for l, (K, relu) in enumerate(metas):
        Ci = h.shape[2]
        p = (K - 1) // 2
        hp = _zpad(h, 0, K - 1 - p, p)                     # (F+K-1, T,     Ci)
        hp = _zpad(hp, 1, K - 1 - p, p)                    # (F+K-1, T+K-1, Ci)

        # im2col: for every output frequency row, fold the K*K taps (and Ci) into the
        # contraction dim; only contiguous row slices, no reshape of strided slices.
        rows = []
        for f in range(F):
            taps = []
            for kf in range(K):
                r = hp[f + kf]                             # (T+K-1, Ci), contiguous row strip
                for kt in range(K):
                    taps.append(r[kt:kt + T, :])           # (T, Ci)
            rows.append(jnp.concatenate(taps, axis=1) if len(taps) > 1 else taps[0])
        slab = jnp.concatenate(rows, axis=0) if F > 1 else rows[0]     # (F*T, K*K*Ci)

        y = jnp.dot(slab.astype(jnp.bfloat16), w_refs[l][...],
                    preferred_element_type=jnp.float32)    # (F*T, Co) f32 accumulator
        y = y + b_refs[l][...]
        if relu:
            y = jnp.maximum(y, 0.0)

        # back to (F, T, Co) for the next layer / the output store
        if F > 1:
            h = jnp.stack([y[f * T:(f + 1) * T, :] for f in range(F)], axis=0)
        else:
            h = y[None]

    o_ref[0] = h.astype(o_ref.dtype)


# --------------------------------- wrappers ---------------------------------- #

def _prep_convt1d_params(w, b):
    """PyTorch ConvTranspose1d weight (Ci,Co,K) -> folded (K*Ci,Co) bf16 + (1,Co) f32 bias."""
    Ci, Co, K = w.shape
    assert K % 2 == 1, "only odd kernel sizes supported ('same' trim equivalence)"
    w_flip = jnp.flip(jnp.transpose(w, (2, 0, 1)), axis=0)          # (K, Ci, Co)
    w_fold = w_flip.reshape(K * Ci, Co).astype(jnp.bfloat16)
    return w_fold, b.reshape(1, Co).astype(jnp.float32), K


def _prep_convt2d_params(w, b):
    """PyTorch ConvTranspose2d weight (Ci,Co,K,K) -> folded (K*K*Ci,Co) bf16 + (1,Co) f32 bias."""
    Ci, Co, Kf, Kt = w.shape
    assert Kf == Kt and Kf % 2 == 1, "only odd, square kernel sizes supported"
    K = Kf
    w_flip = jnp.transpose(jnp.flip(jnp.flip(w, axis=2), axis=3), (2, 3, 0, 1))  # (K,K,Ci,Co)
    w_fold = w_flip.reshape(K * K * Ci, Co).astype(jnp.bfloat16)
    return w_fold, b.reshape(1, Co).astype(jnp.float32), K


_COMPILER_PARAMS = pltpu.CompilerParams(
    dimension_semantics=("parallel",),          # batch axis shards across TCs (v7x megacore)
    vmem_limit_bytes=32 * 1024 * 1024,
)


def conv_transpose_1d_stack(x_btc, params, *, out_dtype=jnp.bfloat16):
    """Fused ConvTranspose1d stack on channels-last input (B, T, C) -> (B, T, C_last)."""
    B, T, C0 = x_btc.shape
    metas, flat = [], []
    in_specs = [pl.BlockSpec((1, T, C0), lambda i: (i, 0, 0))]
    ci = C0
    for (w, b) in params:
        assert w.shape[0] == ci, (w.shape, ci)
        w_fold, b2, K = _prep_convt1d_params(w, b)
        metas.append((K, True))                             # default activation_fn='relu'
        flat += [w_fold, b2]
        in_specs += [pl.BlockSpec(w_fold.shape, lambda i: (0, 0)),
                     pl.BlockSpec(b2.shape, lambda i: (0, 0))]
        ci = w.shape[1]
    return pl.pallas_call(
        functools.partial(_convt1d_stack_kernel, metas=tuple(metas)),
        out_shape=jax.ShapeDtypeStruct((B, T, ci), out_dtype),
        grid=(B,),
        in_specs=in_specs,
        out_specs=pl.BlockSpec((1, T, ci), lambda i: (i, 0, 0)),
        compiler_params=_COMPILER_PARAMS,
    )(x_btc, *flat)


def conv_transpose_2d_stack(x_bftc, params, *, out_dtype=jnp.float32):
    """Fused ConvTranspose2d stack on channels-last input (B, F, T, C) -> (B, F, T, C_last)."""
    B, F, T, C0 = x_bftc.shape
    metas, flat = [], []
    in_specs = [pl.BlockSpec((1, F, T, C0), lambda i: (i, 0, 0, 0))]
    ci = C0
    for (w, b) in params:
        assert w.shape[0] == ci, (w.shape, ci)
        w_fold, b2, K = _prep_convt2d_params(w, b)
        metas.append((K, True))
        flat += [w_fold, b2]
        in_specs += [pl.BlockSpec(w_fold.shape, lambda i: (0, 0)),
                     pl.BlockSpec(b2.shape, lambda i: (0, 0))]
        ci = w.shape[1]
    return pl.pallas_call(
        functools.partial(_convt2d_stack_kernel, metas=tuple(metas)),
        out_shape=jax.ShapeDtypeStruct((B, F, T, ci), out_dtype),
        grid=(B,),
        in_specs=in_specs,
        out_specs=pl.BlockSpec((1, F, T, ci), lambda i: (i, 0, 0, 0)),
        compiler_params=_COMPILER_PARAMS,
    )(x_bftc, *flat)


# ----------------------------- CNNTranspose module --------------------------- #

class CNNTranspose:
    """Combines CNNTranspose1d and CNNTranspose2d sequentially (forward only).

    params_1d: list of (w (Ci,Co,K), b (Co,)) for the ConvTranspose1d stack.
    params_2d: list of (w (Ci,Co,K,K), b (Co,)) for the ConvTranspose2d stack.
    cnn_transpose_2d_in_channels: C of the (B, C, F, T) view between the stacks.
    """

    def __init__(self, params_1d, params_2d, cnn_transpose_2d_in_channels):
        self.params_1d = params_1d
        self.params_2d = params_2d
        self.c2_in = cnn_transpose_2d_in_channels

    def __call__(self, x, sequence_lengths=None):
        B, _, T = x.shape
        # single boundary transpose to channels-last + bf16 for the MXU
        h = jnp.transpose(x, (0, 2, 1)).astype(jnp.bfloat16)            # (B, T, C_lat)
        h = conv_transpose_1d_stack(h, self.params_1d)                  # (B, T, C1) bf16
        # PyTorch x.view(B, c2_in, -1, T) on NCW  ==  channels-last (B, F0, T, c2_in)
        C1 = h.shape[-1]
        F0 = C1 // self.c2_in
        h = jnp.transpose(h.reshape(B, T, self.c2_in, F0), (0, 3, 1, 2))  # (B, F0, T, c2_in)
        h = conv_transpose_2d_stack(h, self.params_2d, out_dtype=jnp.float32)
        y = jnp.transpose(h, (0, 3, 1, 2))                              # NCHW (B, C2, F0, T)
        # stride=1 / same padding -> sequence lengths unchanged
        return y, sequence_lengths


# ------------------------------ reference (f32) ------------------------------ #

def _ref_convt1d(x_ncw, w, b):
    Ci, Co, K = w.shape
    p = (K - 1) // 2
    B, _, T = x_ncw.shape
    xp = jnp.pad(x_ncw, ((0, 0), (0, 0), (K - 1 - p, p)))
    w_flip = jnp.flip(w, axis=2)
    out = b[None, :, None] + sum(
        jnp.einsum('bit,io->bot', xp[:, :, k:k + T], w_flip[:, :, k]) for k in range(K))
    return jax.nn.relu(out)


def _ref_convt2d(x_nchw, w, b):
    Ci, Co, K, _ = w.shape
    p = (K - 1) // 2
    B, _, F, T = x_nchw.shape
    xp = jnp.pad(x_nchw, ((0, 0), (0, 0), (K - 1 - p, p), (K - 1 - p, p)))
    w_flip = jnp.flip(jnp.flip(w, axis=2), axis=3)
    out = b[None, :, None, None] + sum(
        jnp.einsum('bift,io->boft', xp[:, :, kf:kf + F, kt:kt + T], w_flip[:, :, kf, kt])
        for kf in range(K) for kt in range(K))
    return jax.nn.relu(out)


def _ref_forward(x, params_1d, params_2d, c2_in):
    h = x
    for w, b in params_1d:
        h = _ref_convt1d(h, w, b)
    B, C1, T = h.shape
    h = h.reshape(B, c2_in, -1, T)
    for w, b in params_2d:
        h = _ref_convt2d(h, w, b)
    return h


# --------------------------------- init / main -------------------------------- #

def _init_convt1d(key, ci, co, k):
    kw, kb = jax.random.split(key)
    scale = 1.0 / jnp.sqrt(ci * k)
    w = scale * jax.random.normal(kw, (ci, co, k), jnp.float32)
    b = 0.01 * jax.random.normal(kb, (co,), jnp.float32)
    return w, b


def _init_convt2d(key, ci, co, k):
    kw, kb = jax.random.split(key)
    scale = 1.0 / jnp.sqrt(ci * k * k)
    w = scale * jax.random.normal(kw, (ci, co, k, k), jnp.float32)
    b = 0.01 * jax.random.normal(kb, (co,), jnp.float32)
    return w, b


def build_model(key, *, latent_channels, out_channels_1d, c2_in, out_channels_2d, k=3):
    params_1d = []
    ci = latent_channels
    for li, co in enumerate(out_channels_1d):
        params_1d.append(_init_convt1d(jax.random.fold_in(key, 100 + li), ci, co, k))
        ci = co
    assert ci % c2_in == 0, "1d output channels must split into (c2_in, F0)"
    params_2d = []
    ci = c2_in
    for li, co in enumerate(out_channels_2d):
        params_2d.append(_init_convt2d(jax.random.fold_in(key, 200 + li), ci, co, k))
        ci = co
    return CNNTranspose(params_1d, params_2d, c2_in)


if __name__ == "__main__":
    key = jax.random.PRNGKey(0)

    # Small, module-consistent shapes:
    #   latent x: (B=2, C=32, T=8)  (PyTorch NCW)
    #   cnn_transpose_1d out_channels = [32, 64]; 64 = c2_in(16) * F0(4)
    #   cnn_transpose_2d in_channels = 16, out_channels = [16, 1]
    B, C_lat, T = 2, 32, 8
    c2_in, F0 = 16, 4

    x = jax.random.normal(jax.random.fold_in(key, 0), (B, C_lat, T), jnp.float32)
    model = build_model(
        jax.random.fold_in(key, 1),
        latent_channels=C_lat,
        out_channels_1d=[32, c2_in * F0],
        c2_in=c2_in,
        out_channels_2d=[16, 1],
        k=3,
    )

    y, seq_len = model(x, sequence_lengths=None)
    y = jax.block_until_ready(y)

    assert y.shape == (B, 1, F0, T), y.shape
    assert seq_len is None

    # sanity check against the plain-JAX f32 reference (bf16 matmuls -> loose tolerance)
    y_ref = jax.block_until_ready(_ref_forward(x, model.params_1d, model.params_2d, c2_in))
    assert jnp.allclose(y, y_ref, rtol=1e-1, atol=1e-1), float(jnp.max(jnp.abs(y - y_ref)))

    print("KERNEL_OK")
</pallas_src>

<mosaic_0001>
module attributes {stable_mosaic.version = 11 : i64} {
  func.func @_convt1d_stack_kernel(%arg0: i32, %arg1: memref<1x8x32xbf16, #tpu.memory_space<vmem>>, %arg2: memref<96x32xbf16, #tpu.memory_space<vmem>>, %arg3: memref<1x32xf32, #tpu.memory_space<vmem>>, %arg4: memref<96x64xbf16, #tpu.memory_space<vmem>>, %arg5: memref<1x64xf32, #tpu.memory_space<vmem>>, %arg6: memref<1x8x64xbf16, #tpu.memory_space<vmem>>) attributes {dimension_semantics = [#tpu.dimension_semantics<parallel>], iteration_bounds = array<i64: 2>, scalar_prefetch = 0 : i64, scratch_operands = 0 : i64, tpu.core_type = #tpu.core_type<tc>, window_params = [{transform_indices = @transform_0, window_bounds = array<i64: 1, 8, 32>}, {pipeline_mode = #tpu.pipeline_mode<synchronous>, transform_indices = @transform_1, window_bounds = array<i64: 96, 32>}, {pipeline_mode = #tpu.pipeline_mode<synchronous>, transform_indices = @transform_2, window_bounds = array<i64: 1, 32>}, {pipeline_mode = #tpu.pipeline_mode<synchronous>, transform_indices = @transform_3, window_bounds = array<i64: 96, 64>}, {pipeline_mode = #tpu.pipeline_mode<synchronous>, transform_indices = @transform_4, window_bounds = array<i64: 1, 64>}, {transform_indices = @transform_5, window_bounds = array<i64: 1, 8, 64>}]} {
    %c0 = arith.constant 0 : index
    %c0_0 = arith.constant 0 : index
    %c0_1 = arith.constant 0 : index
    %0 = vector.load %arg1[%c0, %c0_0, %c0_1] : memref<1x8x32xbf16, #tpu.memory_space<vmem>>, vector<1x8x32xbf16>
    %1 = vector.shape_cast %0 : vector<1x8x32xbf16> to vector<8x32xbf16>
    %2 = arith.extf %1 : vector<8x32xbf16> to vector<8x32xf32>
    %cst = arith.constant 0.000000e+00 : f32
    %3 = vector.broadcast %cst : f32 to vector<1x32xf32>
    %cst_2 = arith.constant 0.000000e+00 : f32
    %4 = vector.broadcast %cst_2 : f32 to vector<1x32xf32>
    %5 = tpu.concatenate %3, %2, %4 in 0 : vector<1x32xf32>, vector<8x32xf32>, vector<1x32xf32> -> vector<10x32xf32>
    %6 = vector.extract_strided_slice %5 {offsets = [0, 0], sizes = [8, 32], strides = [1, 1]} : vector<10x32xf32> to vector<8x32xf32>
    %7 = vector.extract_strided_slice %5 {offsets = [1, 0], sizes = [8, 32], strides = [1, 1]} : vector<10x32xf32> to vector<8x32xf32>
    %8 = vector.extract_strided_slice %5 {offsets = [2, 0], sizes = [8, 32], strides = [1, 1]} : vector<10x32xf32> to vector<8x32xf32>
    %9 = tpu.concatenate %6, %7, %8 in 1 : vector<8x32xf32>, vector<8x32xf32>, vector<8x32xf32> -> vector<8x96xf32>
    %10 = arith.truncf %9 : vector<8x96xf32> to vector<8x96xbf16>
    %c0_3 = arith.constant 0 : index
    %c0_4 = arith.constant 0 : index
    %11 = vector.load %arg2[%c0_3, %c0_4] : memref<96x32xbf16, #tpu.memory_space<vmem>>, vector<96x32xbf16>
    %cst_5 = arith.constant dense<0.000000e+00> : vector<8x32xf32>
    %12 = tpu.matmul %10, %11, %cst_5 {dimension_numbers = #tpu.dot_dimension_numbers<[1], [0], [0], [1], [0, 0, 1, 1], [], []>} : vector<8x96xbf16>, vector<96x32xbf16>, vector<8x32xf32> -> vector<8x32xf32>
    %c0_6 = arith.constant 0 : index
    %c0_7 = arith.constant 0 : index
    %13 = vector.load %arg3[%c0_6, %c0_7] : memref<1x32xf32, #tpu.memory_space<vmem>>, vector<1x32xf32>
    %14 = vector.broadcast %13 : vector<1x32xf32> to vector<8x32xf32>
    %15 = arith.addf %12, %14 : vector<8x32xf32>
    %cst_8 = arith.constant 0.000000e+00 : f32
    %16 = vector.broadcast %cst_8 : f32 to vector<8x32xf32>
    %17 = arith.maximumf %15, %16 : vector<8x32xf32>
    %cst_9 = arith.constant 0.000000e+00 : f32
    %18 = vector.broadcast %cst_9 : f32 to vector<1x32xf32>
    %cst_10 = arith.constant 0.000000e+00 : f32
    %19 = vector.broadcast %cst_10 : f32 to vector<1x32xf32>
    %20 = tpu.concatenate %18, %17, %19 in 0 : vector<1x32xf32>, vector<8x32xf32>, vector<1x32xf32> -> vector<10x32xf32>
    %21 = vector.extract_strided_slice %20 {offsets = [0, 0], sizes = [8, 32], strides = [1, 1]} : vector<10x32xf32> to vector<8x32xf32>
    %22 = vector.extract_strided_slice %20 {offsets = [1, 0], sizes = [8, 32], strides = [1, 1]} : vector<10x32xf32> to vector<8x32xf32>
    %23 = vector.extract_strided_slice %20 {offsets = [2, 0], sizes = [8, 32], strides = [1, 1]} : vector<10x32xf32> to vector<8x32xf32>
    %24 = tpu.concatenate %21, %22, %23 in 1 : vector<8x32xf32>, vector<8x32xf32>, vector<8x32xf32> -> vector<8x96xf32>
    %25 = arith.truncf %24 : vector<8x96xf32> to vector<8x96xbf16>
    %c0_11 = arith.constant 0 : index
    %c0_12 = arith.constant 0 : index
    %26 = vector.load %arg4[%c0_11, %c0_12] : memref<96x64xbf16, #tpu.memory_space<vmem>>, vector<96x64xbf16>
    %cst_13 = arith.constant dense<0.000000e+00> : vector<8x64xf32>
    %27 = tpu.matmul %25, %26, %cst_13 {dimension_numbers = #tpu.dot_dimension_numbers<[1], [0], [0], [1], [0, 0, 1, 1], [], []>} : vector<8x96xbf16>, vector<96x64xbf16>, vector<8x64xf32> -> vector<8x64xf32>
    %c0_14 = arith.constant 0 : index
    %c0_15 = arith.constant 0 : index
    %28 = vector.load %arg5[%c0_14, %c0_15] : memref<1x64xf32, #tpu.memory_space<vmem>>, vector<1x64xf32>
    %29 = vector.broadcast %28 : vector<1x64xf32> to vector<8x64xf32>
    %30 = arith.addf %27, %29 : vector<8x64xf32>
    %cst_16 = arith.constant 0.000000e+00 : f32
    %31 = vector.broadcast %cst_16 : f32 to vector<8x64xf32>
    %32 = arith.maximumf %30, %31 : vector<8x64xf32>
    %33 = arith.truncf %32 : vector<8x64xf32> to vector<8x64xbf16>
    %c0_17 = arith.constant 0 : index
    %c0_18 = arith.constant 0 : index
    %c0_19 = arith.constant 0 : index
    %34 = vector.load %arg6[%c0_17, %c0_18, %c0_19] : memref<1x8x64xbf16, #tpu.memory_space<vmem>>, vector<1x8x64xbf16>
    %35 = vector.shape_cast %34 : vector<1x8x64xbf16> to vector<8x64xbf16>
    %36 = vector.shape_cast %33 : vector<8x64xbf16> to vector<1x8x64xbf16>
    tpu.vector_store %arg6[%c0_17, %c0_18, %c0_19], %36 {strides = array<i32>} : memref<1x8x64xbf16, #tpu.memory_space<vmem>>, vector<1x8x64xbf16>,
    return
  }
  func.func @transform_0(%arg0: i32) -> (i32, i32, i32) {
    %c0_i32 = arith.constant 0 : i32
    %c0_i32_0 = arith.constant 0 : i32
    %c0_i32_1 = arith.constant 0 : i32
    return %arg0, %c0_i32, %c0_i32_0 : i32, i32, i32
  }
  func.func @transform_1(%arg0: i32) -> (i32, i32) {
    %c0_i32 = arith.constant 0 : i32
    %c0_i32_0 = arith.constant 0 : i32
    %c0_i32_1 = arith.constant 0 : i32
    return %c0_i32, %c0_i32_0 : i32, i32
  }
  func.func @transform_2(%arg0: i32) -> (i32, i32) {
    %c0_i32 = arith.constant 0 : i32
    %c0_i32_0 = arith.constant 0 : i32
    %c0_i32_1 = arith.constant 0 : i32
    return %c0_i32, %c0_i32_0 : i32, i32
  }
  func.func @transform_3(%arg0: i32) -> (i32, i32) {
    %c0_i32 = arith.constant 0 : i32
    %c0_i32_0 = arith.constant 0 : i32
    %c0_i32_1 = arith.constant 0 : i32
    return %c0_i32, %c0_i32_0 : i32, i32
  }
  func.func @transform_4(%arg0: i32) -> (i32, i32) {
    %c0_i32 = arith.constant 0 : i32
    %c0_i32_0 = arith.constant 0 : i32
    %c0_i32_1 = arith.constant 0 : i32
    return %c0_i32, %c0_i32_0 : i32, i32
  }
  func.func @transform_5(%arg0: i32) -> (i32, i32, i32) {
    %c0_i32 = arith.constant 0 : i32
    %c0_i32_0 = arith.constant 0 : i32
    %c0_i32_1 = arith.constant 0 : i32
    return %arg0, %c0_i32, %c0_i32_0 : i32, i32, i32
  }
}

</mosaic_0001>

<llo_original>
// kernel: tpu_custom_call.1
$region0: #{tpu_custom_call.1}
  #allocation0 [shape = 'u32[]', space=smem, size = 0x4, offset = 0x4, fixed_abs, tag = 'smem constant byte address 0x4 - core index']
  #allocation1 [shape = 'u32[72,128]{1,0:T(1,128)}', space=vmem, size = 0x9000, scoped, tag = 'internal scratch']
  %s0 = inlined_call_operand.vmem [shape: bf16[2,8,32], index: 0, kind: input, shape index: {}]
  %s1 = inlined_call_operand.vmem [shape: bf16[96,32], index: 1, kind: input, shape index: {}]
  %s2 = inlined_call_operand.vmem [shape: f32[1,32], index: 2, kind: input, shape index: {}]
  %s3 = inlined_call_operand.vmem [shape: bf16[96,64], index: 3, kind: input, shape index: {}]
  %s4 = inlined_call_operand.vmem [shape: f32[1,64], index: 4, kind: input, shape index: {}]
  %s5 = inlined_call_operand.hbm [shape: bf16[2,8,64], index: 5, kind: output, shape index: {}]
  %s6 = sld [smem:[#allocation0]]
  $region53: #{tpu_custom_call.1} parent=0
    _
  %s8 = ssub.s32 1, %s6
  %s9 = scalar_select 0, %s8, %s6
  $region1: #{tpu_custom_call.1} parent=0
    #allocation2 [shape = 'u8[4096]{0}', space=vmem, size = 0x1000, scoped, tag = 'output window, operand 0']
    #allocation3 [shape = 's32[2]{0}', space=sflag, size = 0x8, scoped, tag = 'scoped memory for tpu_custom_call.1']
    %10 = vsyncpa [#allocation3], 0
    %s11 = scalar_lea.sflag [#allocation3], 1
    %12 = vsyncpa %s11, 0
    loop: start=0, step=1, limit=4
    $region2: #{tpu_custom_call.1} parent=1 // loop_pre_header
      _
    $region3: #{tpu_custom_call.1} parent=1 // loop_header
      %s14 = sphi 0, %s18
      %p15 = scmp.ge.s32.totalorder %s14, 4
      %s24 = sphi 0, %s26
      %s27 = sphi 0, %s24
      %s28 = sphi 0, %s27
      %s44 = sphi 0, %s28
      %s48 = sphi 0, %s48
      %s50 = sphi 0, %s48
      %s51 = sphi 0, %s50
      %s65 = sphi 0, %s51
      %s69 = sphi 0, %s69
      %s71 = sphi 0, %s69
      %s72 = sphi 0, %s71
      %s86 = sphi 0, %s72
      %s90 = sphi 0, %s90
      %s92 = sphi 0, %s90
      %s93 = sphi 0, %s92
      %s107 = sphi 0, %s93
      %s111 = sphi 0, %s111
      %s113 = sphi 0, %s111
      %s114 = sphi 0, %s113
      %s128 = sphi 0, %s114
      %s134 = sphi 0, %s136
      %s137 = sphi 0, %s134
      %s138 = sphi 0, %s137
      %s154 = sphi 0, %s138
    $region4: #{tpu_custom_call.1} parent=1 // loop_header_branch
      %17 = sbr.rel (%p15) target = $region8
    $region5: #{tpu_custom_call.1} parent=1 // loop_body
      %s19 = ssub.s32 %s14, 1
      %s20 = ssub.s32 %s14, 2
      %s21 = sadd.s32 %s14, 1
      %s22 = ssub.s32 %s14, %s21
      %p23 = scmp.eq.s32.totalorder %s22, 0
      %s25 = sadd.s32 %s24, 1
      %s26 = scalar_select %p23, %s24, %s25
      %p29 = pneg %p23
      %p30 = scmp.eq.s32.totalorder %s14, 1
      %p31 = por %p29, %p30
      %p32 = scmp.ne.s32.totalorder %s24, %s27
      %p33 = scmp.eq.s32.totalorder %s14, 0
      %p34 = por %p32, %p33
      %p35 = scmp.ne.s32.totalorder %s24, %s27
      %p36 = scmp.eq.s32.totalorder %s19, 1
      %p37 = por %p35, %p36
      %p38 = scmp.ne.s32.totalorder %s27, %s28
      %p39 = scmp.eq.s32.totalorder %s19, 0
      %p40 = por %p38, %p39
      %p41 = scmp.ne.s32.totalorder %s27, %s28
      %p42 = scmp.eq.s32.totalorder %s20, 1
      %p43 = por %p41, %p42
      %p45 = scmp.ne.s32.totalorder %s28, %s44
      %p46 = scmp.eq.s32.totalorder %s20, 0
      %p47 = por %p45, %p46
      %s49 = sadd.s32 %s48, 1
      %p52 = scmp.eq.s32.totalorder %s14, 1
      %p53 = scmp.ne.s32.totalorder %s48, %s50
      %p54 = scmp.eq.s32.totalorder %s14, 0
      %p55 = por %p53, %p54
      %p56 = scmp.ne.s32.totalorder %s48, %s50
      %p57 = scmp.eq.s32.totalorder %s19, 1
      %p58 = por %p56, %p57
      %p59 = scmp.ne.s32.totalorder %s50, %s51
      %p60 = scmp.eq.s32.totalorder %s19, 0
      %p61 = por %p59, %p60
      %p62 = scmp.ne.s32.totalorder %s50, %s51
      %p63 = scmp.eq.s32.totalorder %s20, 1
      %p64 = por %p62, %p63
      %p66 = scmp.ne.s32.totalorder %s51, %s65
      %p67 = scmp.eq.s32.totalorder %s20, 0
      %p68 = por %p66, %p67
      %s70 = sadd.s32 %s69, 1
      %p73 = scmp.eq.s32.totalorder %s14, 1
      %p74 = scmp.ne.s32.totalorder %s69, %s71
      %p75 = scmp.eq.s32.totalorder %s14, 0
      %p76 = por %p74, %p75
      %p77 = scmp.ne.s32.totalorder %s69, %s71
      %p78 = scmp.eq.s32.totalorder %s19, 1
      %p79 = por %p77, %p78
      %p80 = scmp.ne.s32.totalorder %s71, %s72
      %p81 = scmp.eq.s32.totalorder %s19, 0
      %p82 = por %p80, %p81
      %p83 = scmp.ne.s32.totalorder %s71, %s72
      %p84 = scmp.eq.s32.totalorder %s20, 1
      %p85 = por %p83, %p84
      %p87 = scmp.ne.s32.totalorder %s72, %s86
      %p88 = scmp.eq.s32.totalorder %s20, 0
      %p89 = por %p87, %p88
      %s91 = sadd.s32 %s90, 1
      %p94 = scmp.eq.s32.totalorder %s14, 1
      %p95 = scmp.ne.s32.totalorder %s90, %s92
      %p96 = scmp.eq.s32.totalorder %s14, 0
      %p97 = por %p95, %p96
      %p98 = scmp.ne.s32.totalorder %s90, %s92
      %p99 = scmp.eq.s32.totalorder %s19, 1
      %p100 = por %p98, %p99
      %p101 = scmp.ne.s32.totalorder %s92, %s93
      %p102 = scmp.eq.s32.totalorder %s19, 0
      %p103 = por %p101, %p102
      %p104 = scmp.ne.s32.totalorder %s92, %s93
      %p105 = scmp.eq.s32.totalorder %s20, 1
      %p106 = por %p104, %p105
      %p108 = scmp.ne.s32.totalorder %s93, %s107
      %p109 = scmp.eq.s32.totalorder %s20, 0
      %p110 = por %p108, %p109
      %s112 = sadd.s32 %s111, 1
      %p115 = scmp.eq.s32.totalorder %s14, 1
      %p116 = scmp.ne.s32.totalorder %s111, %s113
      %p117 = scmp.eq.s32.totalorder %s14, 0
      %p118 = por %p116, %p117
      %p119 = scmp.ne.s32.totalorder %s111, %s113
      %p120 = scmp.eq.s32.totalorder %s19, 1
      %p121 = por %p119, %p120
      %p122 = scmp.ne.s32.totalorder %s113, %s114
      %p123 = scmp.eq.s32.totalorder %s19, 0
      %p124 = por %p122, %p123
      %p125 = scmp.ne.s32.totalorder %s113, %s114
      %p126 = scmp.eq.s32.totalorder %s20, 1
      %p127 = por %p125, %p126
      %p129 = scmp.ne.s32.totalorder %s114, %s128
      %p130 = scmp.eq.s32.totalorder %s20, 0
      %p131 = por %p129, %p130
      %s132 = ssub.s32 %s14, %s21
      %p133 = scmp.eq.s32.totalorder %s132, 0
      %s135 = sadd.s32 %s134, 1
      %s136 = scalar_select %p133, %s134, %s135
      %p139 = pneg %p133
      %p140 = scmp.eq.s32.totalorder %s14, 1
      %p141 = por %p139, %p140
      %p142 = scmp.ne.s32.totalorder %s134, %s137
      %p143 = scmp.eq.s32.totalorder %s14, 0
      %p144 = por %p142, %p143
      %p145 = scmp.ne.s32.totalorder %s134, %s137
      %p146 = scmp.eq.s32.totalorder %s19, 1
      %p147 = por %p145, %p146
      %p148 = scmp.ne.s32.totalorder %s137, %s138
      %p149 = scmp.eq.s32.totalorder %s19, 0
      %p150 = por %p148, %p149
      %p151 = scmp.ne.s32.totalorder %s137, %s138
      %p152 = scmp.eq.s32.totalorder %s20, 1
      %p153 = por %p151, %p152
      %p155 = scmp.ne.s32.totalorder %s138, %s154
      %p156 = scmp.eq.s32.totalorder %s20, 0
      %p157 = por %p155, %p156
      %p158 = scmp.le.s32.totalorder 1, %s14
      %p159 = scmp.lt.s32.totalorder %s14, 3
      %p160 = pnand %p158, %p159
      %p161 = pneg %p160
      // Predicated region
      $region9: #{tpu_custom_call.1} parent=5 // pred_check
        _
      $region10: #{tpu_custom_call.1} parent=5 // pred_check_branch
        %163 = sbr.rel (%p160) target = $region12
      $region11: #{tpu_custom_call.1} parent=5 // pred_region
        %s164 = ssub.s32 %s14, 1
        // Predicated region
        $region13: #{tpu_custom_call.1} parent=11 // pred_check
          %p165 = pneg %p61
        $region14: #{tpu_custom_call.1} parent=11 // pred_check_branch
          %167 = sbr.rel (%p165) target = $region16
        $region15: #{tpu_custom_call.1} parent=11 // pred_region
          _
        $region16: #{tpu_custom_call.1} parent=11 // pred_fallthru
          _
        // Predicated region
        $region17: #{tpu_custom_call.1} parent=11 // pred_check
          %p168 = pneg %p82
        $region18: #{tpu_custom_call.1} parent=11 // pred_check_branch
          %170 = sbr.rel (%p168) target = $region20
        $region19: #{tpu_custom_call.1} parent=11 // pred_region
          _
        $region20: #{tpu_custom_call.1} parent=11 // pred_fallthru
          _
        // Predicated region
        $region21: #{tpu_custom_call.1} parent=11 // pred_check
          %p171 = pneg %p103
        $region22: #{tpu_custom_call.1} parent=11 // pred_check_branch
          %173 = sbr.rel (%p171) target = $region24
        $region23: #{tpu_custom_call.1} parent=11 // pred_region
          _
        $region24: #{tpu_custom_call.1} parent=11 // pred_fallthru
          _
        // Predicated region
        $region25: #{tpu_custom_call.1} parent=11 // pred_check
          %p174 = pneg %p124
        $region26: #{tpu_custom_call.1} parent=11 // pred_check_branch
          %176 = sbr.rel (%p174) target = $region28
        $region27: #{tpu_custom_call.1} parent=11 // pred_region
          _
        $region28: #{tpu_custom_call.1} parent=11 // pred_fallthru
          _
      $region12: #{tpu_custom_call.1} parent=5 // pred_fallthru
        _
      %p177 = scmp.lt.s32.totalorder %s14, 2
      // Predicated region
      $region29: #{tpu_custom_call.1} parent=5 // pred_check
        %p178 = pneg %p177
      $region30: #{tpu_custom_call.1} parent=5 // pred_check_branch
        %180 = sbr.rel (%p178) target = $region32
      $region31: #{tpu_custom_call.1} parent=5 // pred_region
        // Predicated region
        $region33: #{tpu_custom_call.1} parent=31 // pred_check
          %p181 = pneg %p34
        $region34: #{tpu_custom_call.1} parent=31 // pred_check_branch
          %183 = sbr.rel (%p181) target = $region36
        $region35: #{tpu_custom_call.1} parent=31 // pred_region
          %p184 = scmp.lt.s32.totalorder %s14, 1
          %s185 = scalar_select %p184, %s14, 1
          %s186 = smul.addr %s185, 4
          %s187 = scalar_lea.vmem %s0, %s186
        $region36: #{tpu_custom_call.1} parent=31 // pred_fallthru
          _
      $region32: #{tpu_custom_call.1} parent=5 // pred_fallthru
        _
      %p188 = scmp.le.s32.totalorder 1, %s14
      %p189 = scmp.lt.s32.totalorder %s14, 3
      %p190 = pnand %p188, %p189
      %p191 = pneg %p190
      // Predicated region
      $region37: #{tpu_custom_call.1} parent=5 // pred_check
        _
      $region38: #{tpu_custom_call.1} parent=5 // pred_check_branch
        %193 = sbr.rel (%p190) target = $region40
      $region39: #{tpu_custom_call.1} parent=5 // pred_region
        %s194 = ssub.s32 %s14, 1
        %p195 = scmp.lt.s32.totalorder %s19, 1
        %s196 = scalar_select %p195, %s19, 1
        %s197 = smul.addr %s196, 4
        %s198 = scalar_lea.vmem %s0, %s197
        %p199 = pneg %p40
        %p200 = pneg %p37
        %p201 = pneg %p61
        %p202 = pneg %p58
        %p203 = pneg %p82
        %p204 = pneg %p79
        %p205 = pneg %p103
        %p206 = pneg %p100
        %p207 = pneg %p124
        %p208 = pneg %p121
        %p209 = pneg %p150
        %p210 = pneg %p147
        %s211 = sand.u32 %s137, 1
        %s212 = scalar_lea.sflag [#allocation3], %s211
        %s213 = sand.u32 %s137, 1
        %s214 = smul.addr %s213, 4
        %s215 = scalar_lea.vmem [#allocation2], %s214
        %p216 = scmp.lt.s32.totalorder %s19, 1
        %s217 = scalar_select %p216, %s19, 1
        %s218 = smul.addr %s217, 4
        %s219 = scalar_lea.vmem %s0, %s218
        %v221 = vld [vmem:[%s219] sm:$0xf]
        %v222 = vunpack.c.l.bf16 %v221
        %v224 = vrot.slane %v222, 7
        %vm226 = vcmask 1040384
        %v227 = vsel %vm226, 0.0, %v224
        %v228 = vsel %vm226, %v224, 0.0
        %vm231 = vcmask 1046528
        %v232 = vrot.slane %v227, 1
        %v233 = vrot.slane %v228, 1
        %v234 = vsel %vm231, %v232, %v233
        %235 = vrot.lane.b32.xlu0 %v234, 32
        %v236 = vpop.permute.xlu0 %235
        %vm238 = vcmask 1045504
        %v239 = vrot.slane %v227, 2
        %v240 = vrot.slane %v228, 2
        %v241 = vsel %vm238, %v239, %v240
        %242 = vrot.lane.b32.xlu0 %v241, 64
        %v243 = vpop.permute.xlu0 %242
        %vm245 = vcmask 261120
        %v246 = vsel %vm245, %v227, %v236
        %vm247 = vcmask 523264
        %v248 = vsel %vm247, %v246, %v243
        %v249 = vpack.c.bf16 %v248, %v248
        %v250 = vld [vmem:[%s1] sm:$0xf]
        %v251 = vld [vmem:[%s1 + $0x4] sm:$0xf]
        %v252 = vld [vmem:[%s1 + $0x8] sm:$0xf]
        %v253 = vld [vmem:[%s1 + $0xc] sm:$0xf]
        %v254 = vld [vmem:[%s1 + $0x10] sm:$0xf]
        %v255 = vld [vmem:[%s1 + $0x14] sm:$0xf]
        %v256 = vld [vmem:[%s1 + $0x18] sm:$0xf]
        %v257 = vld [vmem:[%s1 + $0x1c] sm:$0xf]
        %v258 = vld [vmem:[%s1 + $0x20] sm:$0xf]
        %v259 = vld [vmem:[%s1 + $0x24] sm:$0xf]
        %v260 = vld [vmem:[%s1 + $0x28] sm:$0xf]
        %v261 = vld [vmem:[%s1 + $0x2c] sm:$0xf]
        %v262 = vld [vmem:[%s2] sm:$0x1]
        %v264 = vperm.slane %v262, 0
        %v278 = vunpack.c.l.b16 %v250
        %v279 = vunpack.c.l.b16 %v251
        %v280 = vunpack.c.l.b16 %v252
        %v281 = vunpack.c.l.b16 %v253
        %v282 = vunpack.c.l.b16 %v254
        %v283 = vunpack.c.l.b16 %v255
        %v284 = vunpack.c.l.b16 %v256
        %v285 = vunpack.c.l.b16 %v257
        %v286 = vunpack.c.l.b16 %v258
        %v287 = vunpack.c.l.b16 %v259
        %v288 = vunpack.c.l.b16 %v260
        %v289 = vunpack.c.l.b16 %v261
        %v290 = vpack.c.b16 %v279, %v278
        %v291 = vpack.c.b16 %v281, %v280
        %v292 = vpack.c.b16 %v283, %v282
        %v293 = vpack.c.b16 %v285, %v284
        %v294 = vpack.c.b16 %v287, %v286
        %v295 = vpack.c.b16 %v289, %v288
        %vm302 = vcmask 785408
        %v304 = vsel %vm302, %v249, 0
        %306 = vmatpush.bf16.msra.mxu0 0
        %307 = vmatpush.bf16.msra.mxu0 0
        %308 = vmatpush.bf16.msra.mxu0 %v295
        %309 = vmatpush.bf16.msra.mxu0 %v294
        %310 = vmatpush.bf16.msra.mxu0 %v293
        %311 = vmatpush.bf16.msra.mxu0 %v292
        %312 = vmatpush.bf16.msra.mxu0 %v291
        %313 = vmatpush.bf16.msra.mxu0 %v290
        %314 = vmatmul.bf16.gmra.mxu0 %v304
        %v315 = vpop.f32.mrf.mxu0
        %v316 = vadd.f32 %v264, %v315
        %v317 = vpop.f32.mrf.mxu0
        %318 = vdwg.mxu0
        %v319 = vmax.f32 %v316, 0.0
        %v321 = vrot.slane %v319, 7
        %v323 = vsel %vm226, 0.0, %v321
        %v324 = vsel %vm226, %v321, 0.0
        %v327 = vrot.slane %v323, 1
        %v328 = vrot.slane %v324, 1
        %v329 = vsel %vm231, %v327, %v328
        %330 = vrot.lane.b32.xlu0 %v329, 32
        %v331 = vpop.permute.xlu0 %330
        %v333 = vrot.slane %v323, 2
        %v334 = vrot.slane %v324, 2
        %v335 = vsel %vm238, %v333, %v334
        %336 = vrot.lane.b32.xlu0 %v335, 64
        %v337 = vpop.permute.xlu0 %336
        %v339 = vsel %vm245, %v323, %v331
        %v340 = vsel %vm247, %v339, %v337
        %v341 = vpack.c.bf16 %v340, %v340
        %v342 = vld [vmem:[%s3] sm:$0xf]
        %v343 = vld [vmem:[%s3 + $0x4] sm:$0xf]
        %v344 = vld [vmem:[%s3 + $0x8] sm:$0xf]
        %v345 = vld [vmem:[%s3 + $0xc] sm:$0xf]
        %v346 = vld [vmem:[%s3 + $0x10] sm:$0xf]
        %v347 = vld [vmem:[%s3 + $0x14] sm:$0xf]
        %v348 = vld [vmem:[%s3 + $0x18] sm:$0xf]
        %v349 = vld [vmem:[%s3 + $0x1c] sm:$0xf]
        %v350 = vld [vmem:[%s3 + $0x20] sm:$0xf]
        %v351 = vld [vmem:[%s3 + $0x24] sm:$0xf]
        %v352 = vld [vmem:[%s3 + $0x28] sm:$0xf]
        %v353 = vld [vmem:[%s3 + $0x2c] sm:$0xf]
        %v354 = vld [vmem:[%s4] sm:$0x1]
        %v356 = vperm.slane %v354, 0
        %v370 = vunpack.c.l.b16 %v342
        %v371 = vunpack.c.l.b16 %v343
        %v372 = vunpack.c.l.b16 %v344
        %v373 = vunpack.c.l.b16 %v345
        %v374 = vunpack.c.l.b16 %v346
        %v375 = vunpack.c.l.b16 %v347
        %v376 = vunpack.c.l.b16 %v348
        %v377 = vunpack.c.l.b16 %v349
        %v378 = vunpack.c.l.b16 %v350
        %v379 = vunpack.c.l.b16 %v351
        %v380 = vunpack.c.l.b16 %v352
        %v381 = vunpack.c.l.b16 %v353
        %v382 = vpack.c.b16 %v371, %v370
        %v383 = vpack.c.b16 %v373, %v372
        %v384 = vpack.c.b16 %v375, %v374
        %v385 = vpack.c.b16 %v377, %v376
        %v386 = vpack.c.b16 %v379, %v378
        %v387 = vpack.c.b16 %v381, %v380
        %v395 = vsel %vm302, %v341, 0
        %397 = vmatpush.bf16.msra.mxu0 0
        %398 = vmatpush.bf16.msra.mxu0 0
        %399 = vmatpush.bf16.msra.mxu0 %v387
        %400 = vmatpush.bf16.msra.mxu0 %v386
        %401 = vmatpush.bf16.msra.mxu0 %v385
        %402 = vmatpush.bf16.msra.mxu0 %v384
        %403 = vmatpush.bf16.msra.mxu0 %v383
        %404 = vmatpush.bf16.msra.mxu0 %v382
        %405 = vmatmul.bf16.gmra.mxu0 %v395
        %v406 = vpop.f32.mrf.mxu0
        %v407 = vadd.f32 %v356, %v406
        %v408 = vpop.f32.mrf.mxu0
        %409 = vdwg.mxu0
        %v410 = vmax.f32 %v407, 0.0
        %v411 = vpack.c.bf16 %v410, %v410
        %vm412 = vcmask 519168
        %413 = vst.msk [vmem:[%s215] sm:$0xf] %vm412, %v411
        %s414 = sand.u32 %s137, 1
        %s415 = scalar_lea.sflag [#allocation3], %s414
        %s416 = sand.u32 %s137, 1
        %s417 = smul.addr %s416, 4
        %s418 = scalar_lea.vmem [#allocation2], %s417
        // Predicated region
        $region41: #{tpu_custom_call.1} parent=39 // pred_check
          %p419 = pneg %p147
        $region42: #{tpu_custom_call.1} parent=39 // pred_check_branch
          %421 = sbr.rel (%p419) target = $region44
        $region43: #{tpu_custom_call.1} parent=39 // pred_region
          %423 = vsyncadd %s415, 0
          %s424 = smul.addr %s19, 4
          %s425 = scalar_lea.hbm %s5, %s424
          %s427 = sshll.u32 %s418, 4
          %s428 = int_to_ptr.vmem [resolvable:$true] %s427
          %s429 = sshll.u32 %s425, 4
          %s430 = int_to_ptr.hbm [resolvable:$true] %s429
          %432 = dma.vmem_to_hbm [thread:$0]  %s428, 64, %s430, %s415
        $region44: #{tpu_custom_call.1} parent=39 // pred_fallthru
          _
      $region40: #{tpu_custom_call.1} parent=5 // pred_fallthru
        _
      %p433 = scmp.le.s32.totalorder 2, %s14
      // Predicated region
      $region45: #{tpu_custom_call.1} parent=5 // pred_check
        %p434 = pneg %p433
      $region46: #{tpu_custom_call.1} parent=5 // pred_check_branch
        %436 = sbr.rel (%p434) target = $region48
      $region47: #{tpu_custom_call.1} parent=5 // pred_region
        %s437 = ssub.s32 %s14, 2
        // Predicated region
        $region49: #{tpu_custom_call.1} parent=47 // pred_check
          %p438 = pneg %p153
        $region50: #{tpu_custom_call.1} parent=47 // pred_check_branch
          %440 = sbr.rel (%p438) target = $region52
        $region51: #{tpu_custom_call.1} parent=47 // pred_region
          %s441 = sand.u32 %s138, 1
          %s442 = scalar_lea.sflag [#allocation3], %s441
          %s443 = sand.u32 %s138, 1
          %s444 = smul.addr %s443, 4
          %s445 = scalar_lea.vmem [#allocation2], %s444
          %447 = dma.done %s442, 64
        $region52: #{tpu_custom_call.1} parent=47 // pred_fallthru
          _
      $region48: #{tpu_custom_call.1} parent=5 // pred_fallthru
        _
    $region6: #{tpu_custom_call.1} parent=1 // loop_footer
      %s18 = sadd.s32 1, %s14
    $region7: #{tpu_custom_call.1} parent=1 // loop_footer_branch
      %13 = sbr.rel target = $region3
    $region8: #{tpu_custom_call.1} parent=1 // loop_exit
      _
    %448 = vsyncpa [#allocation3], 1
    %s449 = scalar_lea.sflag [#allocation3], 1
    %450 = vsyncpa %s449, 1

</llo_original>
